<compile_context>
chip_gen: v5e
topology: v5e:2x2
jax: 0.10.0
libtpu: 0.0.40
codegen_flags: <defaults>
</compile_context>

<pallas_src>
import functools

import jax
import jax.numpy as jnp
from jax.experimental import pallas as pl
from jax.experimental.pallas import tpu as pltpu


MIB = 1024 * 1024


def _round_up(n: int, m: int) -> int:
    return ((n + m - 1) // m) * m


def _physical_vmem_bytes() -> int:
    try:
        info = pltpu.get_tpu_info()
        cap = getattr(info, "vmem_capacity_bytes", None) or getattr(info, "vmem_bytes", None)
        if cap:
            return int(cap)
    except Exception:
        pass
    return 64 * MIB  # conservative: v7x per-TC


def _vmem_budget_bytes() -> int:
    phys = _physical_vmem_bytes()
    # Never claim the full physical VMEM (headroom for compiler-internal scratch
    # and double buffers).  v7x (64 MiB)  -> 48 MiB;  v5e/v6e (128 MiB) -> 96 MiB.
    return max(32 * MIB, min(phys * 3 // 4, phys - 12 * MIB))


def _default_tile_rows(N: int, row_gran: int) -> int:
    if N <= 128:
        return _round_up(N, row_gran)
    # Largest candidate that still yields >= 2 row tiles (v7x dual-TC sharding of
    # the "parallel" row axis) while keeping arithmetic intensity vs weight streaming.
    for cand in (1024, 512, 256, 128):
        if _round_up(N, cand) // cand >= 2:
            return cand
    return 128


def _vmem_bytes_tiled(tile_rows, D, tile_f, F, act_bytes, w_bytes):
    x_tiles = 2 * tile_rows * D * act_bytes      # x (residual), double-buffered
    o_tiles = 2 * tile_rows * D * act_bytes      # out, double-buffered
    w1_t = 2 * D * tile_f * w_bytes              # w1 tile, double-buffered
    w2_t = 2 * tile_f * D * w_bytes              # w2 tile, double-buffered
    small = 2 * (3 * D + F) * 4                  # gamma, beta, b2, b1 (resident)
    acc = tile_rows * D * 4                      # f32 accumulator scratch
    xn = tile_rows * D * w_bytes                 # cached LN output scratch
    h = tile_rows * tile_f * 4                   # hidden-activation temporary
    return x_tiles + o_tiles + w1_t + w2_t + small + acc + xn + h


def _vmem_bytes_resident(tile_rows, D, F, act_bytes, w_bytes):
    x_tiles = 2 * tile_rows * D * act_bytes
    o_tiles = 2 * tile_rows * D * act_bytes
    w = 2 * 2 * D * F * w_bytes                  # w1 + w2, conservatively x2
    small = 2 * (3 * D + F) * 4
    h = tile_rows * F * 4
    return x_tiles + o_tiles + w + small + h


def _select_tiles_tiled(D, F, act_bytes, w_bytes, budget, tile_rows, tile_f, row_gran):
    if tile_f is not None:
        return tile_rows, tile_f
    f_cands = [c for c in (2048, 1024, 512, 256, 128) if F % c == 0] or [F]
    tr = tile_rows
    while True:
        for tf in f_cands:
            if _vmem_bytes_tiled(tr, D, tf, F, act_bytes, w_bytes) <= budget:
                return tr, tf
        if tr <= row_gran:
            return tr, f_cands[-1]
        tr = max(row_gran, _round_up(tr // 2, row_gran))


def _layer_norm_f32(x_f32, gamma, beta):
    mean = jnp.mean(x_f32, axis=-1, keepdims=True)
    c = x_f32 - mean
    var = jnp.mean(c * c, axis=-1, keepdims=True)
    return c * jax.lax.rsqrt(var + 1e-5) * gamma + beta


# ---------------------------------------------------------------------------
# Kernel 1: F-tiled (reduction axis over dff), LN cached once per row tile.
# ---------------------------------------------------------------------------
def _ffn_tiled_kernel(x_ref, gamma_ref, beta_ref, w1_ref, b1_ref, w2_ref, b2_ref,
                      o_ref, acc_ref, xn_ref):
    """One (row_tile, f_tile) grid step.

    x_ref:   (TM, D)    rows (also the residual); resident across the F axis
    gamma/beta: (1, D)  LayerNorm affine params (f32)
    w1_ref:  (D, TF)    first linear weight tile (bf16)
    b1_ref:  (n_f, TF)  full first bias, reshaped; row f is this step's slice
    w2_ref:  (TF, D)    second linear weight tile (bf16)
    b2_ref:  (1, D)     second bias (f32)
    o_ref:   (TM, D)    output rows (written on the last F step)
    acc_ref: (TM, D)    f32 accumulator scratch, resident across the F axis
    xn_ref:  (TM, D)    cached LayerNorm output in MXU dtype (written at f==0)
    """
    f_idx = pl.program_id(1)
    n_f = pl.num_programs(1)

    # LayerNorm only once per row tile; cache already cast to the MXU dtype.
    @pl.when(f_idx == 0)
    def _():
        x = x_ref[...].astype(jnp.float32)
        xn = _layer_norm_f32(x, gamma_ref[...], beta_ref[...])
        xn_ref[...] = xn.astype(xn_ref.dtype)

    xn = xn_ref[...]

    # Linear(d_model -> dff_tile) + bias + ReLU.  bf16 MXU operands, f32 accumulate.
    h = jnp.dot(xn, w1_ref[...], preferred_element_type=jnp.float32)
    b1_row = b1_ref[pl.ds(f_idx, 1), :]                       # (1, TF), resident bias
    h = jnp.maximum(h + b1_row.astype(jnp.float32), 0.0)

    # Partial Linear(dff_tile -> d_model), accumulated over the F grid axis.
    partial = jnp.dot(h.astype(w2_ref.dtype), w2_ref[...],
                      preferred_element_type=jnp.float32)

    @pl.when(f_idx == 0)
    def _():
        acc_ref[...] = partial          # write-first (no zero-init + add pass)

    @pl.when(f_idx > 0)
    def _():
        acc_ref[...] += partial

    # TODO(synk): dropout is eval-mode identity; stochastic dropout would use
    # pltpu.prng_seed / pltpu.prng_random_bits on acc before the final store.
    @pl.when(f_idx == n_f - 1)
    def _():
        y = acc_ref[...] + b2_ref[...].astype(jnp.float32)
        o_ref[...] = (y + x_ref[...].astype(jnp.float32)).astype(o_ref.dtype)


# ---------------------------------------------------------------------------
# Kernel 2: fully VMEM-resident weights (no reduction grid axis).
# ---------------------------------------------------------------------------
def _ffn_resident_kernel(x_ref, gamma_ref, beta_ref, w1_ref, b1_ref, w2_ref, b2_ref,
                         o_ref):
    x = x_ref[...].astype(jnp.float32)
    xn = _layer_norm_f32(x, gamma_ref[...], beta_ref[...])
    h = jnp.dot(xn.astype(w1_ref.dtype), w1_ref[...],
                preferred_element_type=jnp.float32)
    h = jnp.maximum(h + b1_ref[...].astype(jnp.float32), 0.0)
    y = jnp.dot(h.astype(w2_ref.dtype), w2_ref[...],
                preferred_element_type=jnp.float32)
    y = y + b2_ref[...].astype(jnp.float32)
    o_ref[...] = (y + x).astype(o_ref.dtype)


@functools.partial(jax.jit,
                   static_argnames=("tile_rows", "tile_f", "weights_resident", "mxu_dtype"))
def encoder_ffn_sublayer(x, gamma, beta, w1, b1, w2, b2, *,
                         tile_rows=None, tile_f=None, weights_resident=None,
                         mxu_dtype=jnp.bfloat16):
    """x: (B, S, D) -> (B, S, D); semantics of EncoderFeedForwardSubLayer.forward (eval)."""
    B, S, D = x.shape
    F = w1.shape[-1]
    N = B * S

    act_bytes = jnp.dtype(x.dtype).itemsize
    w_bytes = jnp.dtype(mxu_dtype).itemsize
    row_gran = 16 if min(act_bytes, w_bytes) == 2 else 8
    budget = _vmem_budget_bytes()

    if tile_rows is None:
        tile_rows = _default_tile_rows(N, row_gran)
    else:
        tile_rows = _round_up(tile_rows, row_gran)
    assert tile_rows % 8 == 0

    if weights_resident is None:
        weights_resident = (
            _vmem_bytes_resident(tile_rows, D, F, act_bytes, w_bytes) <= budget)

    if not weights_resident:
        tile_rows, tile_f = _select_tiles_tiled(
            D, F, act_bytes, w_bytes, budget, tile_rows, tile_f, row_gran)
        assert F % tile_f == 0

    N_pad = _round_up(N, tile_rows)
    num_row_tiles = N_pad // tile_rows

    x2d = x.reshape(N, D)
    if N_pad != N:
        x2d = jnp.pad(x2d, ((0, N_pad - N), (0, 0)))

    gamma2 = jnp.asarray(gamma, jnp.float32).reshape(1, D)
    beta2 = jnp.asarray(beta, jnp.float32).reshape(1, D)
    b2_2 = jnp.asarray(b2, jnp.float32).reshape(1, D)
    # NOTE: for best perf store w1/w2 in bf16 in HBM; the casts below are then no-ops.
    w1m = jnp.asarray(w1).astype(mxu_dtype)
    w2m = jnp.asarray(w2).astype(mxu_dtype)

    weight_stream = 1 if weights_resident else num_row_tiles
    cost = pl.CostEstimate(
        flops=4 * N_pad * D * F + 10 * N_pad * D,            # 2 GEMMs + LN/relu/residual
        transcendentals=N_pad,                               # rsqrt per row
        bytes_accessed=(2 * N_pad * D * act_bytes            # read x, write out
                        + weight_stream * 2 * D * F * w_bytes  # weights per row tile
                        + (3 * D + F) * 4),                  # gamma, beta, b1, b2
    )

    if weights_resident:
        b1_2 = jnp.asarray(b1, jnp.float32).reshape(1, F)
        out2d = pl.pallas_call(
            _ffn_resident_kernel,
            out_shape=jax.ShapeDtypeStruct((N_pad, D), x.dtype),
            grid_spec=pltpu.PrefetchScalarGridSpec(
                num_scalar_prefetch=0,
                grid=(num_row_tiles,),
                in_specs=[
                    pl.BlockSpec((tile_rows, D), lambda i: (i, 0)),   # x (residual)
                    pl.BlockSpec((1, D), lambda i: (0, 0)),           # gamma
                    pl.BlockSpec((1, D), lambda i: (0, 0)),           # beta
                    pl.BlockSpec((D, F), lambda i: (0, 0)),           # w1 (resident)
                    pl.BlockSpec((1, F), lambda i: (0, 0)),           # b1 (resident)
                    pl.BlockSpec((F, D), lambda i: (0, 0)),           # w2 (resident)
                    pl.BlockSpec((1, D), lambda i: (0, 0)),           # b2
                ],
                out_specs=pl.BlockSpec((tile_rows, D), lambda i: (i, 0)),
            ),
            compiler_params=pltpu.CompilerParams(
                dimension_semantics=("parallel",),
                vmem_limit_bytes=budget,
            ),
            cost_estimate=cost,
        )(x2d, gamma2, beta2, w1m, b1_2, w2m, b2_2)
    else:
        n_f = F // tile_f
        b1_r = jnp.asarray(b1, jnp.float32).reshape(n_f, tile_f)   # resident, row = F step
        out2d = pl.pallas_call(
            _ffn_tiled_kernel,
            out_shape=jax.ShapeDtypeStruct((N_pad, D), x.dtype),
            grid_spec=pltpu.PrefetchScalarGridSpec(
                num_scalar_prefetch=0,
                grid=(num_row_tiles, n_f),
                in_specs=[
                    pl.BlockSpec((tile_rows, D), lambda i, f: (i, 0)),   # x (residual)
                    pl.BlockSpec((1, D), lambda i, f: (0, 0)),           # gamma
                    pl.BlockSpec((1, D), lambda i, f: (0, 0)),           # beta
                    pl.BlockSpec((D, tile_f), lambda i, f: (0, f)),      # w1 tile
                    pl.BlockSpec((n_f, tile_f), lambda i, f: (0, 0)),    # b1 (resident)
                    pl.BlockSpec((tile_f, D), lambda i, f: (f, 0)),      # w2 tile
                    pl.BlockSpec((1, D), lambda i, f: (0, 0)),           # b2
                ],
                out_specs=pl.BlockSpec((tile_rows, D), lambda i, f: (i, 0)),
                scratch_shapes=[
                    pltpu.VMEM((tile_rows, D), jnp.float32),   # f32 accumulator
                    pltpu.VMEM((tile_rows, D), mxu_dtype),     # cached LayerNorm output
                ],
            ),
            compiler_params=pltpu.CompilerParams(
                dimension_semantics=("parallel", "arbitrary"),
                vmem_limit_bytes=budget,
            ),
            cost_estimate=cost,
        )(x2d, gamma2, beta2, w1m, b1_r, w2m, b2_2)

    return out2d[:N].reshape(B, S, D)


# ---------------------------------------------------------------------------
# References + tests
# ---------------------------------------------------------------------------
def _reference_f32(x, gamma, beta, w1, b1, w2, b2):
    """Pure f32 reference (torch semantics, eval-mode dropout)."""
    xf = x.astype(jnp.float32)
    xn = _layer_norm_f32(xf, gamma.reshape(1, 1, -1), beta.reshape(1, 1, -1))
    h = jnp.maximum(jnp.dot(xn, w1) + b1.reshape(1, 1, -1), 0.0)
    y = jnp.dot(h, w2) + b2.reshape(1, 1, -1)
    return (y + xf).astype(x.dtype)


def _reference_matched(x, gamma, beta, w1, b1, w2, b2, mxu_dtype=jnp.bfloat16):
    """Reference with the same bf16 MXU-operand rounding as the kernel."""
    xf = x.astype(jnp.float32)
    xn = _layer_norm_f32(xf, gamma.reshape(1, 1, -1), beta.reshape(1, 1, -1))
    h = jnp.dot(xn.astype(mxu_dtype), w1.astype(mxu_dtype),
                preferred_element_type=jnp.float32)
    h = jnp.maximum(h + b1.reshape(1, 1, -1), 0.0)
    y = jnp.dot(h.astype(mxu_dtype), w2.astype(mxu_dtype),
                preferred_element_type=jnp.float32)
    return (y + b2.reshape(1, 1, -1) + xf).astype(x.dtype)


def _make_params(key, D, FF):
    kw1, kb1, kw2, kb2 = jax.random.split(key, 4)
    gamma = jnp.ones((1, D), dtype=jnp.float32)
    beta = jnp.zeros((1, D), dtype=jnp.float32)
    w1 = jax.random.normal(kw1, (D, FF), dtype=jnp.float32) * (1.0 / jnp.sqrt(D))
    b1 = jax.random.normal(kb1, (1, FF), dtype=jnp.float32) * 0.01
    w2 = jax.random.normal(kw2, (FF, D), dtype=jnp.float32) * (1.0 / jnp.sqrt(FF))
    b2 = jax.random.normal(kb2, (1, D), dtype=jnp.float32) * 0.01
    return gamma, beta, w1, b1, w2, b2


def _check(out, x, params, label, atol_m=2e-3, atol_f=5e-2):
    ref_m = _reference_matched(x, *params)
    ref_f = _reference_f32(x, *params)
    assert out.shape == x.shape, label
    assert jnp.allclose(out, ref_m, atol=atol_m, rtol=atol_m), \
        f"{label}: mismatch vs bf16-matched reference"
    assert jnp.allclose(out, ref_f, atol=atol_f, rtol=atol_f), \
        f"{label}: mismatch vs f32 reference"


if __name__ == "__main__":
    key = jax.random.PRNGKey(0)

    # Test 1: small shapes (batch=2, seq=8, d_model=32, dff=64), default (resident) path.
    B, S, D, FF = 2, 8, 32, 64
    kx, kp = jax.random.split(key)
    x = jax.random.normal(kx, (B, S, D), dtype=jnp.float32)
    params = _make_params(kp, D, FF)

    out = jax.block_until_ready(encoder_ffn_sublayer(x, *params))
    _check(out, x, params, "small/default")

    # Test 1b: same small shapes, forced F-tiled path (single F step, tile_f = F fallback).
    out_t = jax.block_until_ready(
        encoder_ffn_sublayer(x, *params, weights_resident=False))
    _check(out_t, x, params, "small/tiled")

    # Test 2: shapes that exercise row padding, 2 row tiles, F-axis accumulation and
    # the cached-LayerNorm scratch (N=300 -> padded to 512; F=1024 with tile_f=256 -> 4 F steps).
    B2, S2, D2, FF2 = 3, 100, 128, 1024
    kx2, kp2 = jax.random.split(kp)
    x2 = jax.random.normal(kx2, (B2, S2, D2), dtype=jnp.float32)
    params2 = _make_params(kp2, D2, FF2)

    out2 = jax.block_until_ready(
        encoder_ffn_sublayer(x2, *params2, weights_resident=False, tile_f=256))
    _check(out2, x2, params2, "large/tiled")

    # Test 2b: same shapes on the default (resident-weights) path.
    out2r = jax.block_until_ready(encoder_ffn_sublayer(x2, *params2))
    _check(out2r, x2, params2, "large/resident")

    print("KERNEL_OK")
</pallas_src>

<mosaic_0001>
module attributes {stable_mosaic.version = 11 : i64} {
  func.func @_ffn_resident_kernel(%arg0: i32, %arg1: memref<16x32xf32, #tpu.memory_space<vmem>>, %arg2: memref<1x32xf32, #tpu.memory_space<vmem>>, %arg3: memref<1x32xf32, #tpu.memory_space<vmem>>, %arg4: memref<32x64xbf16, #tpu.memory_space<vmem>>, %arg5: memref<1x64xf32, #tpu.memory_space<vmem>>, %arg6: memref<64x32xbf16, #tpu.memory_space<vmem>>, %arg7: memref<1x32xf32, #tpu.memory_space<vmem>>, %arg8: memref<16x32xf32, #tpu.memory_space<vmem>>) attributes {dimension_semantics = [#tpu.dimension_semantics<parallel>], iteration_bounds = array<i64: 1>, scalar_prefetch = 0 : i64, scratch_operands = 0 : i64, tpu.core_type = #tpu.core_type<tc>, window_params = [{transform_indices = @transform_0, window_bounds = array<i64: 16, 32>}, {pipeline_mode = #tpu.pipeline_mode<synchronous>, transform_indices = @transform_1, window_bounds = array<i64: 1, 32>}, {pipeline_mode = #tpu.pipeline_mode<synchronous>, transform_indices = @transform_2, window_bounds = array<i64: 1, 32>}, {pipeline_mode = #tpu.pipeline_mode<synchronous>, transform_indices = @transform_3, window_bounds = array<i64: 32, 64>}, {pipeline_mode = #tpu.pipeline_mode<synchronous>, transform_indices = @transform_4, window_bounds = array<i64: 1, 64>}, {pipeline_mode = #tpu.pipeline_mode<synchronous>, transform_indices = @transform_5, window_bounds = array<i64: 64, 32>}, {pipeline_mode = #tpu.pipeline_mode<synchronous>, transform_indices = @transform_6, window_bounds = array<i64: 1, 32>}, {transform_indices = @transform_7, window_bounds = array<i64: 16, 32>}]} {
    %c0 = arith.constant 0 : index
    %c0_0 = arith.constant 0 : index
    %0 = vector.load %arg1[%c0, %c0_0] : memref<16x32xf32, #tpu.memory_space<vmem>>, vector<16x32xf32>
    %c0_1 = arith.constant 0 : index
    %c0_2 = arith.constant 0 : index
    %1 = vector.load %arg2[%c0_1, %c0_2] : memref<1x32xf32, #tpu.memory_space<vmem>>, vector<1x32xf32>
    %c0_3 = arith.constant 0 : index
    %c0_4 = arith.constant 0 : index
    %2 = vector.load %arg3[%c0_3, %c0_4] : memref<1x32xf32, #tpu.memory_space<vmem>>, vector<1x32xf32>
    %cst = arith.constant dense<0.000000e+00> : vector<16xf32>
    %3 = vector.multi_reduction <add>, %0, %cst [1] : vector<16x32xf32> to vector<16xf32>
    %4 = vector.shape_cast %3 : vector<16xf32> to vector<16x1xf32>
    %cst_5 = arith.constant 3.200000e+01 : f32
    %5 = vector.broadcast %cst_5 : f32 to vector<16x1xf32>
    %6 = arith.divf %4, %5 : vector<16x1xf32>
    %7 = vector.broadcast %6 : vector<16x1xf32> to vector<16x32xf32>
    %8 = arith.subf %0, %7 : vector<16x32xf32>
    %9 = arith.mulf %8, %8 : vector<16x32xf32>
    %cst_6 = arith.constant dense<0.000000e+00> : vector<16xf32>
    %10 = vector.multi_reduction <add>, %9, %cst_6 [1] : vector<16x32xf32> to vector<16xf32>
    %11 = vector.shape_cast %10 : vector<16xf32> to vector<16x1xf32>
    %cst_7 = arith.constant 3.200000e+01 : f32
    %12 = vector.broadcast %cst_7 : f32 to vector<16x1xf32>
    %13 = arith.divf %11, %12 : vector<16x1xf32>
    %cst_8 = arith.constant 9.99999974E-6 : f32
    %14 = vector.broadcast %cst_8 : f32 to vector<16x1xf32>
    %15 = arith.addf %13, %14 : vector<16x1xf32>
    %16 = math.rsqrt %15 : vector<16x1xf32>
    %17 = vector.broadcast %16 : vector<16x1xf32> to vector<16x32xf32>
    %18 = arith.mulf %8, %17 : vector<16x32xf32>
    %19 = vector.broadcast %1 : vector<1x32xf32> to vector<16x32xf32>
    %20 = arith.mulf %18, %19 : vector<16x32xf32>
    %21 = vector.broadcast %2 : vector<1x32xf32> to vector<16x32xf32>
    %22 = arith.addf %20, %21 : vector<16x32xf32>
    %23 = arith.truncf %22 : vector<16x32xf32> to vector<16x32xbf16>
    %c0_9 = arith.constant 0 : index
    %c0_10 = arith.constant 0 : index
    %24 = vector.load %arg4[%c0_9, %c0_10] : memref<32x64xbf16, #tpu.memory_space<vmem>>, vector<32x64xbf16>
    %cst_11 = arith.constant dense<0.000000e+00> : vector<16x64xf32>
    %25 = tpu.matmul %23, %24, %cst_11 {dimension_numbers = #tpu.dot_dimension_numbers<[1], [0], [0], [1], [0, 0, 1, 1], [], []>} : vector<16x32xbf16>, vector<32x64xbf16>, vector<16x64xf32> -> vector<16x64xf32>
    %c0_12 = arith.constant 0 : index
    %c0_13 = arith.constant 0 : index
    %26 = vector.load %arg5[%c0_12, %c0_13] : memref<1x64xf32, #tpu.memory_space<vmem>>, vector<1x64xf32>
    %27 = vector.broadcast %26 : vector<1x64xf32> to vector<16x64xf32>
    %28 = arith.addf %25, %27 : vector<16x64xf32>
    %cst_14 = arith.constant 0.000000e+00 : f32
    %29 = vector.broadcast %cst_14 : f32 to vector<16x64xf32>
    %30 = arith.maximumf %28, %29 : vector<16x64xf32>
    %31 = arith.truncf %30 : vector<16x64xf32> to vector<16x64xbf16>
    %c0_15 = arith.constant 0 : index
    %c0_16 = arith.constant 0 : index
    %32 = vector.load %arg6[%c0_15, %c0_16] : memref<64x32xbf16, #tpu.memory_space<vmem>>, vector<64x32xbf16>
    %cst_17 = arith.constant dense<0.000000e+00> : vector<16x32xf32>
    %33 = tpu.matmul %31, %32, %cst_17 {dimension_numbers = #tpu.dot_dimension_numbers<[1], [0], [0], [1], [0, 0, 1, 1], [], []>} : vector<16x64xbf16>, vector<64x32xbf16>, vector<16x32xf32> -> vector<16x32xf32>
    %c0_18 = arith.constant 0 : index
    %c0_19 = arith.constant 0 : index
    %34 = vector.load %arg7[%c0_18, %c0_19] : memref<1x32xf32, #tpu.memory_space<vmem>>, vector<1x32xf32>
    %35 = vector.broadcast %34 : vector<1x32xf32> to vector<16x32xf32>
    %36 = arith.addf %33, %35 : vector<16x32xf32>
    %37 = arith.addf %36, %0 : vector<16x32xf32>
    %c0_20 = arith.constant 0 : index
    %c0_21 = arith.constant 0 : index
    %38 = vector.load %arg8[%c0_20, %c0_21] : memref<16x32xf32, #tpu.memory_space<vmem>>, vector<16x32xf32>
    tpu.vector_store %arg8[%c0_20, %c0_21], %37 {strides = array<i32>} : memref<16x32xf32, #tpu.memory_space<vmem>>, vector<16x32xf32>,
    return
  }
  func.func @transform_0(%arg0: i32) -> (i32, i32) {
    %c0_i32 = arith.constant 0 : i32
    %c0_i32_0 = arith.constant 0 : i32
    return %arg0, %c0_i32 : i32, i32
  }
  func.func @transform_1(%arg0: i32) -> (i32, i32) {
    %c0_i32 = arith.constant 0 : i32
    %c0_i32_0 = arith.constant 0 : i32
    %c0_i32_1 = arith.constant 0 : i32
    return %c0_i32, %c0_i32_0 : i32, i32
  }
  func.func @transform_2(%arg0: i32) -> (i32, i32) {
    %c0_i32 = arith.constant 0 : i32
    %c0_i32_0 = arith.constant 0 : i32
    %c0_i32_1 = arith.constant 0 : i32
    return %c0_i32, %c0_i32_0 : i32, i32
  }
  func.func @transform_3(%arg0: i32) -> (i32, i32) {
    %c0_i32 = arith.constant 0 : i32
    %c0_i32_0 = arith.constant 0 : i32
    %c0_i32_1 = arith.constant 0 : i32
    return %c0_i32, %c0_i32_0 : i32, i32
  }
  func.func @transform_4(%arg0: i32) -> (i32, i32) {
    %c0_i32 = arith.constant 0 : i32
    %c0_i32_0 = arith.constant 0 : i32
    %c0_i32_1 = arith.constant 0 : i32
    return %c0_i32, %c0_i32_0 : i32, i32
  }
  func.func @transform_5(%arg0: i32) -> (i32, i32) {
    %c0_i32 = arith.constant 0 : i32
    %c0_i32_0 = arith.constant 0 : i32
    %c0_i32_1 = arith.constant 0 : i32
    return %c0_i32, %c0_i32_0 : i32, i32
  }
  func.func @transform_6(%arg0: i32) -> (i32, i32) {
    %c0_i32 = arith.constant 0 : i32
    %c0_i32_0 = arith.constant 0 : i32
    %c0_i32_1 = arith.constant 0 : i32
    return %c0_i32, %c0_i32_0 : i32, i32
  }
  func.func @transform_7(%arg0: i32) -> (i32, i32) {
    %c0_i32 = arith.constant 0 : i32
    %c0_i32_0 = arith.constant 0 : i32
    return %arg0, %c0_i32 : i32, i32
  }
}

</mosaic_0001>

<llo_original>
// kernel: encoder_ffn_sublayer.1
$region0: #{encoder_ffn_sublayer.1}
  #allocation0 [shape = 'u32[]', space=smem, size = 0x4, offset = 0x4, fixed_abs, tag = 'smem constant byte address 0x4 - core index']
  #allocation1 [shape = 'u32[72,128]{1,0:T(1,128)}', space=vmem, size = 0x9000, scoped, tag = 'internal scratch']
  %s0 = inlined_call_operand.vmem [shape: f32[16,32], index: 0, kind: input, shape index: {}]
  %s1 = inlined_call_operand.vmem [shape: f32[1,32], index: 1, kind: input, shape index: {}]
  %s2 = inlined_call_operand.vmem [shape: f32[1,32], index: 2, kind: input, shape index: {}]
  %s3 = inlined_call_operand.vmem [shape: bf16[32,64], index: 3, kind: input, shape index: {}]
  %s4 = inlined_call_operand.vmem [shape: f32[1,64], index: 4, kind: input, shape index: {}]
  %s5 = inlined_call_operand.vmem [shape: bf16[64,32], index: 5, kind: input, shape index: {}]
  %s6 = inlined_call_operand.vmem [shape: f32[1,32], index: 6, kind: input, shape index: {}]
  %s7 = inlined_call_operand.hbm [shape: f32[16,32], index: 7, kind: output, shape index: {}]
  %s8 = sld [smem:[#allocation0]]
  $region38: #{encoder_ffn_sublayer.1} parent=0
    _
  %s10 = ssub.s32 1, %s8
  %s11 = scalar_select 0, %s10, %s8
  $region1: #{encoder_ffn_sublayer.1} parent=0
    #allocation2 [shape = 'u8[8192]{0}', space=vmem, size = 0x2000, scoped, tag = 'output window, operand 0, single buffered']
    #allocation3 [shape = 's32[1]{0}', space=sflag, size = 0x4, scoped, tag = 'scoped memory for encoder_ffn_sublayer.1']
    %12 = vsyncpa [#allocation3], 0
    // Predicated region
    $region2: #{encoder_ffn_sublayer.1} parent=1 // pred_check
      _
    $region3: #{encoder_ffn_sublayer.1} parent=1 // pred_check_branch
      %14 = sbr.rel (0) target = $region5
    $region4: #{encoder_ffn_sublayer.1} parent=1 // pred_region
      _
    $region5: #{encoder_ffn_sublayer.1} parent=1 // pred_fallthru
      _
    // Predicated region
    $region6: #{encoder_ffn_sublayer.1} parent=1 // pred_check
      _
    $region7: #{encoder_ffn_sublayer.1} parent=1 // pred_check_branch
      %16 = sbr.rel (0) target = $region9
    $region8: #{encoder_ffn_sublayer.1} parent=1 // pred_region
      _
    $region9: #{encoder_ffn_sublayer.1} parent=1 // pred_fallthru
      _
    // Predicated region
    $region10: #{encoder_ffn_sublayer.1} parent=1 // pred_check
      _
    $region11: #{encoder_ffn_sublayer.1} parent=1 // pred_check_branch
      %18 = sbr.rel (0) target = $region13
    $region12: #{encoder_ffn_sublayer.1} parent=1 // pred_region
      _
    $region13: #{encoder_ffn_sublayer.1} parent=1 // pred_fallthru
      _
    // Predicated region
    $region14: #{encoder_ffn_sublayer.1} parent=1 // pred_check
      _
    $region15: #{encoder_ffn_sublayer.1} parent=1 // pred_check_branch
      %20 = sbr.rel (0) target = $region17
    $region16: #{encoder_ffn_sublayer.1} parent=1 // pred_region
      _
    $region17: #{encoder_ffn_sublayer.1} parent=1 // pred_fallthru
      _
    // Predicated region
    $region18: #{encoder_ffn_sublayer.1} parent=1 // pred_check
      _
    $region19: #{encoder_ffn_sublayer.1} parent=1 // pred_check_branch
      %22 = sbr.rel (0) target = $region21
    $region20: #{encoder_ffn_sublayer.1} parent=1 // pred_region
      _
    $region21: #{encoder_ffn_sublayer.1} parent=1 // pred_fallthru
      _
    // Predicated region
    $region22: #{encoder_ffn_sublayer.1} parent=1 // pred_check
      _
    $region23: #{encoder_ffn_sublayer.1} parent=1 // pred_check_branch
      %24 = sbr.rel (0) target = $region25
    $region24: #{encoder_ffn_sublayer.1} parent=1 // pred_region
      _
    $region25: #{encoder_ffn_sublayer.1} parent=1 // pred_fallthru
      _
    // Predicated region
    $region26: #{encoder_ffn_sublayer.1} parent=1 // pred_check
      _
    $region27: #{encoder_ffn_sublayer.1} parent=1 // pred_check_branch
      %26 = sbr.rel (0) target = $region29
    $region28: #{encoder_ffn_sublayer.1} parent=1 // pred_region
      _
    $region29: #{encoder_ffn_sublayer.1} parent=1 // pred_fallthru
      _
    %v28 = vld [vmem:[%s0] sm:$0xff]
    %v29 = vld [vmem:[%s0 + $0x8] sm:$0xff]
    %v30 = vld [vmem:[%s1] sm:$0x1]
    %v31 = vld [vmem:[%s2] sm:$0x1]
    %vm32 = vcmask 261120
    %v33 = vsel %vm32, %v28, 0.0
    %34 = vadd.xlane.f32.xlu0 %v33
    %v35 = vpop.xlane.xlu0 %34
    %v36 = vsel %vm32, %v29, 0.0
    %37 = vadd.xlane.f32.xlu0 %v36
    %v38 = vpop.xlane.xlu0 %37
    %v39 = vrcp.pop 32.0
    %v40 = vmul.f32 32.0, %v39
    %v41 = vsub.f32 1.0, %v40
    %v42 = vmul.f32 %v39, %v41
    %v43 = vadd.f32 %v39, %v42
    %vm44 = vweird.f32 %v39
    %v45 = vsel %vm44, %v39, %v43
    %v46 = vmul.f32 %v35, %v45
    %v47 = vmul.f32 %v38, %v45
    %v48 = vsub.f32 %v28, %v46
    %v49 = vsub.f32 %v29, %v47
    %v50 = vmul.f32 %v48, %v48
    %v51 = vmul.f32 %v49, %v49
    %v52 = vsel %vm32, %v50, 0.0
    %53 = vadd.xlane.f32.xlu0 %v52
    %v54 = vpop.xlane.xlu0 %53
    %v55 = vsel %vm32, %v51, 0.0
    %56 = vadd.xlane.f32.xlu0 %v55
    %v57 = vpop.xlane.xlu0 %56
    %v58 = vmul.f32 %v54, %v45
    %v59 = vmul.f32 %v57, %v45
    %v60 = vadd.f32 %v58, 1e-05
    %v61 = vadd.f32 %v59, 1e-05
    %v62 = vrsqrt.pop %v60
    %v63 = vmul.f32 %v62, %v60
    %v64 = vmul.f32 %v63, %v62
    %v65 = vmul.f32 0.5, %v64
    %v66 = vsub.f32 1.5, %v65
    %v67 = vmul.f32 %v62, %v66
    %vm68 = vweird.f32 %v60
    %vm69 = vweird.f32 %v62
    %vm70 = vmor %vm68, %vm69
    %v71 = vsel %vm70, %v62, %v67
    %v72 = vrsqrt.pop %v61
    %v73 = vmul.f32 %v72, %v61
    %v74 = vmul.f32 %v73, %v72
    %v75 = vmul.f32 0.5, %v74
    %v76 = vsub.f32 1.5, %v75
    %v77 = vmul.f32 %v72, %v76
    %vm78 = vweird.f32 %v61
    %vm79 = vweird.f32 %v72
    %vm80 = vmor %vm78, %vm79
    %v81 = vsel %vm80, %v72, %v77
    %v82 = vmul.f32 %v48, %v71
    %v83 = vmul.f32 %v49, %v81
    %v85 = vperm.slane %v30, 0
    %v87 = vmul.f32 %v82, %v85
    %v88 = vmul.f32 %v83, %v85
    %v90 = vperm.slane %v31, 0
    %v92 = vadd.f32 %v87, %v90
    %v93 = vadd.f32 %v88, %v90
    %v94 = vpack.c.bf16 %v93, %v92
    %v95 = vld [vmem:[%s3] sm:$0xf]
    %v96 = vld [vmem:[%s3 + $0x4] sm:$0xf]
    %v97 = vld [vmem:[%s3 + $0x8] sm:$0xf]
    %v98 = vld [vmem:[%s3 + $0xc] sm:$0xf]
    %v99 = vld [vmem:[%s4] sm:$0x1]
    %v101 = vperm.slane %v99, 0
    %v107 = vunpack.c.l.b16 %v95
    %v108 = vunpack.c.l.b16 %v96
    %v109 = vunpack.c.l.b16 %v97
    %v110 = vunpack.c.l.b16 %v98
    %v111 = vpack.c.b16 %v108, %v107
    %v112 = vpack.c.b16 %v110, %v109
    %v116 = vsel %vm32, %v94, 0
    %118 = vmatpush.bf16.msra.mxu0 0
    %119 = vmatpush.bf16.msra.mxu0 0
    %120 = vmatpush.bf16.msra.mxu0 0
    %121 = vmatpush.bf16.msra.mxu0 0
    %122 = vmatpush.bf16.msra.mxu0 0
    %123 = vmatpush.bf16.msra.mxu0 0
    %124 = vmatpush.bf16.msra.mxu0 %v112
    %125 = vmatpush.bf16.msra.mxu0 %v111
    %126 = vmatmul.bf16.gmra.mxu0 %v116
    %v127 = vpop.f32.mrf.mxu0
    %v128 = vadd.f32 %v101, %v127
    %v129 = vpop.f32.mrf.mxu0
    %v130 = vadd.f32 %v101, %v129
    %131 = vdwg.mxu0
    %v132 = vmax.f32 %v128, 0.0
    %v133 = vmax.f32 %v130, 0.0
    %v134 = vpack.c.bf16 %v133, %v132
    %v135 = vld [vmem:[%s5] sm:$0xf]
    %v136 = vld [vmem:[%s5 + $0x4] sm:$0xf]
    %v137 = vld [vmem:[%s5 + $0x8] sm:$0xf]
    %v138 = vld [vmem:[%s5 + $0xc] sm:$0xf]
    %v139 = vld [vmem:[%s5 + $0x10] sm:$0xf]
    %v140 = vld [vmem:[%s5 + $0x14] sm:$0xf]
    %v141 = vld [vmem:[%s5 + $0x18] sm:$0xf]
    %v142 = vld [vmem:[%s5 + $0x1c] sm:$0xf]
    %v143 = vld [vmem:[%s6] sm:$0x1]
    %v145 = vperm.slane %v143, 0
    %v155 = vunpack.c.l.b16 %v135
    %v156 = vunpack.c.l.b16 %v136
    %v157 = vunpack.c.l.b16 %v137
    %v158 = vunpack.c.l.b16 %v138
    %v159 = vunpack.c.l.b16 %v139
    %v160 = vunpack.c.l.b16 %v140
    %v161 = vunpack.c.l.b16 %v141
    %v162 = vunpack.c.l.b16 %v142
    %v163 = vpack.c.b16 %v156, %v155
    %v164 = vpack.c.b16 %v158, %v157
    %v165 = vpack.c.b16 %v160, %v159
    %v166 = vpack.c.b16 %v162, %v161
    %vm171 = vcmask 523264
    %v173 = vsel %vm171, %v134, 0
    %175 = vmatpush.bf16.msra.mxu0 0
    %176 = vmatpush.bf16.msra.mxu0 0
    %177 = vmatpush.bf16.msra.mxu0 0
    %178 = vmatpush.bf16.msra.mxu0 0
    %179 = vmatpush.bf16.msra.mxu0 %v166
    %180 = vmatpush.bf16.msra.mxu0 %v165
    %181 = vmatpush.bf16.msra.mxu0 %v164
    %182 = vmatpush.bf16.msra.mxu0 %v163
    %183 = vmatmul.bf16.gmra.mxu0 %v173
    %v184 = vpop.f32.mrf.mxu0
    %v185 = vadd.f32 %v145, %v184
    %v186 = vpop.f32.mrf.mxu0
    %v187 = vadd.f32 %v145, %v186
    %188 = vdwg.mxu0
    %v189 = vadd.f32 %v185, %v28
    %v190 = vadd.f32 %v187, %v29
    %191 = vst.msk [vmem:[#allocation2] sm:$0xff] %vm32, %v189
    %192 = vst.msk [vmem:[#allocation2 + $0x8] sm:$0xff] %vm32, %v190
    // Predicated region
    $region30: #{encoder_ffn_sublayer.1} parent=1 // pred_check
      _
    $region31: #{encoder_ffn_sublayer.1} parent=1 // pred_check_branch
      %194 = sbr.rel (0) target = $region33
    $region32: #{encoder_ffn_sublayer.1} parent=1 // pred_region
      %196 = vsyncadd [#allocation3], 0
      %s197 = sshll.u32 [#allocation2], 4
      %s198 = int_to_ptr.vmem [resolvable:$true] %s197
      %s199 = sshll.u32 %s7, 4
      %s200 = int_to_ptr.hbm [resolvable:$true] %s199
      %205 = dma.vmem_to_hbm [thread:$0]  %s198, 256, %s200, [#allocation3], 128, 128, 8
    $region33: #{encoder_ffn_sublayer.1} parent=1 // pred_fallthru
      _
    // Predicated region
    $region34: #{encoder_ffn_sublayer.1} parent=1 // pred_check
      _
    $region35: #{encoder_ffn_sublayer.1} parent=1 // pred_check_branch
      %207 = sbr.rel (0) target = $region37
    $region36: #{encoder_ffn_sublayer.1} parent=1 // pred_region
      %209 = dma.done [#allocation3], 256
    $region37: #{encoder_ffn_sublayer.1} parent=1 // pred_fallthru
      _
    %210 = vsyncpa [#allocation3], 1

</llo_original>
